<compile_context>
chip_gen: v7x
topology: tpu7x:2x2x1
jax: 0.10.0
libtpu: 0.0.40
codegen_flags: <defaults>
</compile_context>

<pallas_src>
import jax
import jax.numpy as jnp
import numpy as np
from jax.experimental import pallas as pl
from jax.experimental.pallas import tpu as pltpu


def encoder_features(feature_map_nchw):
    """EncoderCNN.forward minus the frozen ResNet-50 backbone.

    (B, C, H, W) -> permute(0, 2, 3, 1) -> view(B, H*W, C).
    Pure layout plumbing, done in XLA (no compute worth a kernel).
    """
    b, c, h, w = feature_map_nchw.shape
    return jnp.transpose(feature_map_nchw, (0, 2, 3, 1)).reshape(b, h * w, c)


def attention_kernel(feat_ref, wah_ref, sbias_ref, uw_ref, aw_ref,
                     alpha_ref, ctx_ref):
    # feat_ref : (BB, L, E)  bf16  per-step batch block of region features
    # wah_ref  : (BB, 1, A)  f32   hoisted W(hidden) + Ub + Wb for this block
    # sbias_ref: (1, L, 1)   f32   0 for real rows, -1e30 for L-padding rows
    # uw_ref   : (E, A)      bf16  U weight (pre-transposed MXU operand)
    # aw_ref   : (1, 1, A)   f32   A weight as a lane-major row
    # alpha_ref: (BB, L)     f32   attention weights (lane-dense store)
    # ctx_ref  : (BB, 1, E)  f32   context vectors (lane-dense store)
    bb, seq_len, enc_dim = feat_ref.shape
    attn_dim = uw_ref.shape[1]

    f = feat_ref[...]                                      # (BB, L, E) bf16

    # --- U projection: ONE batched MXU matmul (M = BB*L), bf16 operands,
    #     f32 accumulate.  L % 8 == 0 so the reshape is a layout no-op.
    f2 = f.reshape(bb * seq_len, enc_dim)
    u_hs = jnp.dot(f2, uw_ref[...],
                   preferred_element_type=jnp.float32)     # (BB*L, A) f32
    u_hs = u_hs.reshape(bb, seq_len, attn_dim)             # (BB, L, A)

    # --- add hoisted hidden projection (both biases folded in); f32 tanh
    #     (EUP path available on every generation).
    combined = jnp.tanh(u_hs + wah_ref[...])               # (BB, L, A) f32

    # --- scores: VPU multiply + lane-dense reduce over A (no (A,1) matmul,
    #     no transpose), kept in the broadcast-ready (BB, L, 1) layout.
    scores = jnp.sum(combined * aw_ref[...], axis=-1, keepdims=True)
    scores = scores + sbias_ref[...]                       # mask padded rows

    # --- softmax over L (f32 epilogue); divide -> EUP reciprocal.
    m = jnp.max(scores, axis=1, keepdims=True)             # (BB, 1, 1)
    e = jnp.exp(scores - m)                                # (BB, L, 1)
    denom = jnp.sum(e, axis=1, keepdims=True)              # (BB, 1, 1)
    alpha = e * pl.reciprocal(denom, approx=True)          # (BB, L, 1)

    alpha_ref[...] = alpha[..., 0]                         # (BB, L) lane-dense

    # --- context: bf16 features * f32 alpha (promotes to f32) summed over L.
    ctx_ref[...] = jnp.sum(f * alpha, axis=1, keepdims=True)   # (BB, 1, E) f32


def _hw_config():
    """Generation-aware tiling / VMEM configuration."""
    kind = ""
    try:
        kind = jax.devices()[0].device_kind.lower()
    except Exception:  # pragma: no cover - defensive; keep conservative defaults
        pass

    if ("v5e" in kind) or ("v5 lite" in kind) or ("v5litepod" in kind):
        # 128 MiB physical VMEM, but scoped default is only 16 MiB -> raise it.
        return dict(gen="v5e", mxu_m=128, min_steps=3, two_cores=False,
                    vmem_budget=64 << 20, vmem_limit=100 << 20)
    if "v6" in kind:
        # 128 MiB physical VMEM; 2x256^2 MXU.
        return dict(gen="v6e", mxu_m=256, min_steps=3, two_cores=False,
                    vmem_budget=64 << 20, vmem_limit=100 << 20)
    if "v7" in kind or "7x" in kind:
        # 64 MiB physical VMEM per TC; two TensorCores per chip.
        return dict(gen="v7x", mxu_m=256, min_steps=3, two_cores=True,
                    vmem_budget=30 << 20, vmem_limit=48 << 20)
    # Unknown generation: conservative.
    return dict(gen="unknown", mxu_m=256, min_steps=3, two_cores=False,
                vmem_budget=20 << 20, vmem_limit=32 << 20)


def _choose_block_b(batch, seq_len, enc_dim, attn_dim, hw):
    """Pick the per-step batch block BB.

    Constraints / preferences (in priority order):
      * BB divides B; BB % 8 == 0 unless BB == B (lane-dense (BB, L) alpha block).
      * double-buffered blocks + in-kernel intermediates fit the VMEM budget.
      * B // BB >= min_steps so the feature DMA pipelines against compute.
      * on v7x the grid length is even so both TensorCores get work.
      * MXU M = BB * L is a (large) multiple of the MXU tile.
      * then the biggest BB (amortizes the ~0.35 us/grid-step overhead).
    """
    def vmem_bytes(bb):
        # Double-buffered pipelined blocks (inputs + outputs + constant weights).
        feat = bb * seq_len * enc_dim * 2              # bf16 features block
        wah = bb * attn_dim * 4                        # hoisted hidden projection
        sbias = seq_len * 4                            # score bias row
        alpha_o = bb * seq_len * 4                     # alpha block
        ctx_o = bb * enc_dim * 4                       # context block
        wts = enc_dim * attn_dim * 2 + attn_dim * 4    # bf16 Uw + f32 Aw row
        dbuf = 2 * (feat + wah + sbias + alpha_o + ctx_o + wts)
        # Single-buffered in-kernel intermediates (live within one step).
        inter = (bb * seq_len * attn_dim * 4           # u_hs (f32 MXU result)
                 + bb * seq_len * attn_dim * 4         # tanh(combined) f32
                 + bb * seq_len * enc_dim * 4          # f32 context product
                 + 6 * bb * seq_len * 4                # scores/exp/alpha/stats
                 + bb * enc_dim * 4)                   # f32 context accumulator
        return dbuf + inter

    cands = [d for d in range(1, batch + 1)
             if batch % d == 0 and (d == batch or d % 8 == 0)]
    fitting = [d for d in cands if vmem_bytes(d) <= hw["vmem_budget"]]
    if not fitting:
        fitting = [min(cands)]

    def pref(d):
        steps = batch // d
        m = d * seq_len
        return (
            steps >= hw["min_steps"],                          # DMA pipelining
            (steps % 2 == 0) if hw["two_cores"] else True,     # both v7x TCs busy
            m % hw["mxu_m"] == 0,                              # full MXU M tiles
            m >= hw["mxu_m"],
            d,                                                 # then biggest
        )

    return max(fitting, key=pref)


def attention_forward(features, hidden_state, params, block_b=None):
    """features: (B, L, E) f32, hidden_state: (B, D) f32.

    params: Uw (E, A), Ub (1, A), Ww (D, A), Wb (1, A), Aw (A, 1), Ab (1, 1)
    (nn.Linear weights stored pre-transposed as (in, out)).
    Returns (alpha (B, L), context (B, E)).
    """
    B, L, E = features.shape
    A = params["Uw"].shape[1]
    hw = _hw_config()

    # Pad L to a multiple of 8 (real ResNet-50: L = 49 -> 56) so the in-kernel
    # (BB, L, E) -> (BB*L, E) merge stays a layout no-op; mask padded rows.
    L_pad = -(-L // 8) * 8
    feats_bf16 = features.astype(jnp.bfloat16)             # cast ONCE, halves HBM
    if L_pad != L:
        feats_bf16 = jnp.pad(feats_bf16, ((0, 0), (0, L_pad - L), (0, 0)))
    score_bias = jnp.where(jnp.arange(L_pad) < L, 0.0, -1e30)
    score_bias = score_bias.astype(jnp.float32).reshape(1, L_pad, 1)

    # Hoisted hidden projection: one full-precision (B, D) @ (D, A) matmul for
    # the whole batch with Ub + Wb folded in.  Ab is added uniformly to every
    # score -> cancels in the softmax -> dropped (mathematically exact).
    w_ah = (jnp.dot(hidden_state, params["Ww"],
                    precision=jax.lax.Precision.HIGHEST)
            + params["Wb"] + params["Ub"])
    w_ah = w_ah.astype(jnp.float32).reshape(B, 1, A)

    uw_bf16 = params["Uw"].astype(jnp.bfloat16)             # bf16 MXU operand
    aw_row = params["Aw"].reshape(1, 1, A).astype(jnp.float32)

    BB = _choose_block_b(B, L_pad, E, A, hw) if block_b is None else block_b
    assert B % BB == 0, (B, BB)
    grid = (B // BB,)

    in_specs = [
        pl.BlockSpec((BB, L_pad, E), lambda b: (b, 0, 0)),   # bf16 features
        pl.BlockSpec((BB, 1, A), lambda b: (b, 0, 0)),       # hoisted w_ah block
        pl.BlockSpec((1, L_pad, 1), lambda b: (0, 0, 0)),    # L-padding score bias
        pl.BlockSpec((E, A), lambda b: (0, 0)),              # U weight (bf16)
        pl.BlockSpec((1, 1, A), lambda b: (0, 0, 0)),        # A weight row
    ]
    out_specs = [
        pl.BlockSpec((BB, L_pad), lambda b: (b, 0)),         # alpha (lane-dense)
        pl.BlockSpec((BB, 1, E), lambda b: (b, 0, 0)),       # context
    ]
    out_shape = (
        jax.ShapeDtypeStruct((B, L_pad), jnp.float32),
        jax.ShapeDtypeStruct((B, 1, E), jnp.float32),
    )

    cost = pl.CostEstimate(
        flops=(2 * B * L_pad * E * A        # U projection
               + 2 * B * L_pad * A          # score multiply-reduce
               + 2 * B * L_pad * E),        # context weighted sum
        transcendentals=B * L_pad * A + B * L_pad,   # tanh + exp
        bytes_accessed=(B * L_pad * E * 2            # bf16 features
                        + E * A * 2 + A * 4          # weights
                        + B * A * 4                  # hoisted w_ah
                        + B * L_pad * 4 + B * E * 4),  # outputs
    )

    alpha_p, ctx3 = pl.pallas_call(
        attention_kernel,
        out_shape=out_shape,
        grid_spec=pltpu.PrefetchScalarGridSpec(
            num_scalar_prefetch=0,
            grid=grid,
            in_specs=in_specs,
            out_specs=out_specs,
        ),
        # Parallel batch axis: sharded across both TensorCores on v7x
        # (grid length is kept even there), neutral on v5e/v6e.
        compiler_params=pltpu.CompilerParams(
            dimension_semantics=("parallel",),
            vmem_limit_bytes=hw["vmem_limit"],
        ),
        cost_estimate=cost,
    )(feats_bf16, w_ah, score_bias, uw_bf16, aw_row)

    # Strip L padding / squeeze the kernel layouts back to the module's shapes.
    return alpha_p[:, :L], ctx3.reshape(B, E)


def reference_forward(features, hidden_state, params):
    """Plain-JAX f32 reference of the PyTorch attention forward."""
    u_hs = features @ params["Uw"] + params["Ub"][0]
    w_ah = hidden_state @ params["Ww"] + params["Wb"][0]
    combined = jnp.tanh(u_hs + w_ah[:, None, :])
    scores = (combined @ params["Aw"])[..., 0] + params["Ab"][0, 0]
    alpha = jax.nn.softmax(scores, axis=1)
    ctx = (features * alpha[:, :, None]).sum(axis=1)
    return alpha, ctx


if __name__ == "__main__":
    # Small, self-consistent shapes (scaled-down 2048/512/256 production dims).
    H = W = 4                      # spatial size of the (fake) ResNet feature map
    encoder_dim = 256
    decoder_dim = 128
    attention_dim = 128

    key = jax.random.PRNGKey(0)
    k_params, k_data = jax.random.split(key)
    k_uw, k_ub, k_ww, k_wb, k_aw, k_ab = jax.random.split(k_params, 6)

    params = {
        "Uw": 0.05 * jax.random.normal(k_uw, (encoder_dim, attention_dim), jnp.float32),
        "Ub": 0.05 * jax.random.normal(k_ub, (1, attention_dim), jnp.float32),
        "Ww": 0.05 * jax.random.normal(k_ww, (decoder_dim, attention_dim), jnp.float32),
        "Wb": 0.05 * jax.random.normal(k_wb, (1, attention_dim), jnp.float32),
        "Aw": 0.05 * jax.random.normal(k_aw, (attention_dim, 1), jnp.float32),
        "Ab": 0.05 * jax.random.normal(k_ab, (1, 1), jnp.float32),
    }

    # Two cases: the tiny B=2 demo (grid=(1,), BB == B) and a B=64 case that
    # exercises the multi-step pipelined path (BB < B, several grid steps).
    for B in (2, 64):
        kb = jax.random.fold_in(k_data, B)
        k_feat, k_hid = jax.random.split(kb)

        # Stand-in for the frozen ResNet-50 output feature map (B, C, H, W),
        # then the EncoderCNN permute + flatten -> (B, H*W, C) region features.
        feat_map = jax.random.normal(k_feat, (B, encoder_dim, H, W), jnp.float32)
        features = encoder_features(feat_map)               # (B, 16, 256)
        hidden_state = jax.random.normal(k_hid, (B, decoder_dim), jnp.float32)

        alpha, ctx = attention_forward(features, hidden_state, params)
        jax.block_until_ready((alpha, ctx))

        # Correctness check vs. the f32 reference.  The kernel uses bf16
        # features / bf16 MXU operands with f32 accumulation, so compare with
        # a modest tolerance.
        alpha_ref, ctx_ref = reference_forward(features, hidden_state, params)
        assert np.allclose(np.asarray(alpha), np.asarray(alpha_ref),
                           atol=1e-2, rtol=1e-2), f"alpha mismatch at B={B}"
        assert np.allclose(np.asarray(ctx), np.asarray(ctx_ref),
                           atol=2e-2, rtol=2e-2), f"context mismatch at B={B}"

    print("KERNEL_OK")
</pallas_src>

<mosaic_0001>
module attributes {stable_mosaic.version = 11 : i64} {
  func.func @attention_kernel(%arg0: i32, %arg1: memref<2x16x256xbf16, #tpu.memory_space<vmem>>, %arg2: memref<2x1x128xf32, #tpu.memory_space<vmem>>, %arg3: memref<1x16x1xf32, #tpu.memory_space<vmem>>, %arg4: memref<256x128xbf16, #tpu.memory_space<vmem>>, %arg5: memref<1x1x128xf32, #tpu.memory_space<vmem>>, %arg6: memref<2x16xf32, #tpu.memory_space<vmem>>, %arg7: memref<2x1x256xf32, #tpu.memory_space<vmem>>) attributes {dimension_semantics = [#tpu.dimension_semantics<parallel>], iteration_bounds = array<i64: 1>, scalar_prefetch = 0 : i64, scratch_operands = 0 : i64, tpu.core_type = #tpu.core_type<tc>, window_params = [{transform_indices = @transform_0, window_bounds = array<i64: 2, 16, 256>}, {transform_indices = @transform_1, window_bounds = array<i64: 2, 1, 128>}, {pipeline_mode = #tpu.pipeline_mode<synchronous>, transform_indices = @transform_2, window_bounds = array<i64: 1, 16, 1>}, {pipeline_mode = #tpu.pipeline_mode<synchronous>, transform_indices = @transform_3, window_bounds = array<i64: 256, 128>}, {pipeline_mode = #tpu.pipeline_mode<synchronous>, transform_indices = @transform_4, window_bounds = array<i64: 1, 1, 128>}, {transform_indices = @transform_5, window_bounds = array<i64: 2, 16>}, {transform_indices = @transform_6, window_bounds = array<i64: 2, 1, 256>}]} {
    %c0 = arith.constant 0 : index
    %c0_0 = arith.constant 0 : index
    %c0_1 = arith.constant 0 : index
    %0 = vector.load %arg1[%c0, %c0_0, %c0_1] : memref<2x16x256xbf16, #tpu.memory_space<vmem>>, vector<2x16x256xbf16>
    %1 = vector.shape_cast %0 : vector<2x16x256xbf16> to vector<32x256xbf16>
    %c0_2 = arith.constant 0 : index
    %c0_3 = arith.constant 0 : index
    %2 = vector.load %arg4[%c0_2, %c0_3] : memref<256x128xbf16, #tpu.memory_space<vmem>>, vector<256x128xbf16>
    %cst = arith.constant dense<0.000000e+00> : vector<32x128xf32>
    %3 = tpu.matmul %1, %2, %cst {dimension_numbers = #tpu.dot_dimension_numbers<[1], [0], [0], [1], [0, 0, 1, 1], [], []>} : vector<32x256xbf16>, vector<256x128xbf16>, vector<32x128xf32> -> vector<32x128xf32>
    %4 = vector.shape_cast %3 : vector<32x128xf32> to vector<2x16x128xf32>
    %c0_4 = arith.constant 0 : index
    %c0_5 = arith.constant 0 : index
    %c0_6 = arith.constant 0 : index
    %5 = vector.load %arg2[%c0_4, %c0_5, %c0_6] : memref<2x1x128xf32, #tpu.memory_space<vmem>>, vector<2x1x128xf32>
    %6 = vector.broadcast %5 : vector<2x1x128xf32> to vector<2x16x128xf32>
    %7 = arith.addf %4, %6 : vector<2x16x128xf32>
    %8 = math.tanh %7 : vector<2x16x128xf32>
    %c0_7 = arith.constant 0 : index
    %c0_8 = arith.constant 0 : index
    %c0_9 = arith.constant 0 : index
    %9 = vector.load %arg5[%c0_7, %c0_8, %c0_9] : memref<1x1x128xf32, #tpu.memory_space<vmem>>, vector<1x1x128xf32>
    %10 = vector.broadcast %9 : vector<1x1x128xf32> to vector<2x16x128xf32>
    %11 = arith.mulf %8, %10 : vector<2x16x128xf32>
    %cst_10 = arith.constant dense<0.000000e+00> : vector<2x16xf32>
    %12 = vector.multi_reduction <add>, %11, %cst_10 [2] : vector<2x16x128xf32> to vector<2x16xf32>
    %13 = vector.shape_cast %12 : vector<2x16xf32> to vector<2x16x1xf32>
    %c0_11 = arith.constant 0 : index
    %c0_12 = arith.constant 0 : index
    %c0_13 = arith.constant 0 : index
    %14 = vector.load %arg3[%c0_11, %c0_12, %c0_13] : memref<1x16x1xf32, #tpu.memory_space<vmem>>, vector<1x16x1xf32>
    %15 = vector.broadcast %14 : vector<1x16x1xf32> to vector<2x16x1xf32>
    %16 = arith.addf %13, %15 : vector<2x16x1xf32>
    %cst_14 = arith.constant dense<0xFF800000> : vector<2x1xf32>
    %17 = vector.multi_reduction <maximumf>, %16, %cst_14 [1] : vector<2x16x1xf32> to vector<2x1xf32>
    %18 = vector.shape_cast %17 : vector<2x1xf32> to vector<2x1x1xf32>
    %19 = vector.broadcast %18 : vector<2x1x1xf32> to vector<2x16x1xf32>
    %20 = arith.subf %16, %19 : vector<2x16x1xf32>
    %21 = math.exp %20 : vector<2x16x1xf32>
    %cst_15 = arith.constant dense<0.000000e+00> : vector<2x1xf32>
    %22 = vector.multi_reduction <add>, %21, %cst_15 [1] : vector<2x16x1xf32> to vector<2x1xf32>
    %23 = vector.shape_cast %22 : vector<2x1xf32> to vector<2x1x1xf32>
    %24 = tpu.reciprocal %23 {approx = true} : vector<2x1x1xf32> -> vector<2x1x1xf32>
    %25 = vector.broadcast %24 : vector<2x1x1xf32> to vector<2x16x1xf32>
    %26 = arith.mulf %21, %25 : vector<2x16x1xf32>
    %27 = vector.shape_cast %26 : vector<2x16x1xf32> to vector<2x16xf32>
    %c0_16 = arith.constant 0 : index
    %c0_17 = arith.constant 0 : index
    %28 = vector.load %arg6[%c0_16, %c0_17] : memref<2x16xf32, #tpu.memory_space<vmem>>, vector<2x16xf32>
    tpu.vector_store %arg6[%c0_16, %c0_17], %27 {strides = array<i32>} : memref<2x16xf32, #tpu.memory_space<vmem>>, vector<2x16xf32>,
    %29 = arith.extf %0 : vector<2x16x256xbf16> to vector<2x16x256xf32>
    %30 = vector.broadcast %26 : vector<2x16x1xf32> to vector<2x16x256xf32>
    %31 = arith.mulf %29, %30 : vector<2x16x256xf32>
    %cst_18 = arith.constant dense<0.000000e+00> : vector<2x256xf32>
    %32 = vector.multi_reduction <add>, %31, %cst_18 [1] : vector<2x16x256xf32> to vector<2x256xf32>
    %33 = vector.shape_cast %32 : vector<2x256xf32> to vector<2x1x256xf32>
    %c0_19 = arith.constant 0 : index
    %c0_20 = arith.constant 0 : index
    %c0_21 = arith.constant 0 : index
    %34 = vector.load %arg7[%c0_19, %c0_20, %c0_21] : memref<2x1x256xf32, #tpu.memory_space<vmem>>, vector<2x1x256xf32>
    tpu.vector_store %arg7[%c0_19, %c0_20, %c0_21], %33 {strides = array<i32>} : memref<2x1x256xf32, #tpu.memory_space<vmem>>, vector<2x1x256xf32>,
    return
  }
  func.func @transform_0(%arg0: i32) -> (i32, i32, i32) {
    %c0_i32 = arith.constant 0 : i32
    %c0_i32_0 = arith.constant 0 : i32
    %c0_i32_1 = arith.constant 0 : i32
    return %arg0, %c0_i32, %c0_i32_0 : i32, i32, i32
  }
  func.func @transform_1(%arg0: i32) -> (i32, i32, i32) {
    %c0_i32 = arith.constant 0 : i32
    %c0_i32_0 = arith.constant 0 : i32
    %c0_i32_1 = arith.constant 0 : i32
    return %arg0, %c0_i32, %c0_i32_0 : i32, i32, i32
  }
  func.func @transform_2(%arg0: i32) -> (i32, i32, i32) {
    %c0_i32 = arith.constant 0 : i32
    %c0_i32_0 = arith.constant 0 : i32
    %c0_i32_1 = arith.constant 0 : i32
    %c0_i32_2 = arith.constant 0 : i32
    return %c0_i32, %c0_i32_0, %c0_i32_1 : i32, i32, i32
  }
  func.func @transform_3(%arg0: i32) -> (i32, i32) {
    %c0_i32 = arith.constant 0 : i32
    %c0_i32_0 = arith.constant 0 : i32
    %c0_i32_1 = arith.constant 0 : i32
    return %c0_i32, %c0_i32_0 : i32, i32
  }
  func.func @transform_4(%arg0: i32) -> (i32, i32, i32) {
    %c0_i32 = arith.constant 0 : i32
    %c0_i32_0 = arith.constant 0 : i32
    %c0_i32_1 = arith.constant 0 : i32
    %c0_i32_2 = arith.constant 0 : i32
    return %c0_i32, %c0_i32_0, %c0_i32_1 : i32, i32, i32
  }
  func.func @transform_5(%arg0: i32) -> (i32, i32) {
    %c0_i32 = arith.constant 0 : i32
    %c0_i32_0 = arith.constant 0 : i32
    return %arg0, %c0_i32 : i32, i32
  }
  func.func @transform_6(%arg0: i32) -> (i32, i32, i32) {
    %c0_i32 = arith.constant 0 : i32
    %c0_i32_0 = arith.constant 0 : i32
    %c0_i32_1 = arith.constant 0 : i32
    return %arg0, %c0_i32, %c0_i32_0 : i32, i32, i32
  }
}

</mosaic_0001>

<llo_original>
// kernel: tpu_custom_call.1
$region0: #{tpu_custom_call.1}
  #allocation0 [shape = 'u32[]', space=smem, size = 0x4, offset = 0x4, fixed_abs, tag = 'smem constant byte address 0x4 - core index']
  #allocation1 [shape = 'u32[144,128]{1,0:T(1,128)}', space=vmem, size = 0x12000, scoped, tag = 'internal scratch']
  %s0 = inlined_call_operand.hbm [shape: bf16[2,16,256], index: 0, kind: input, shape index: {}]
  %s1 = inlined_call_operand.vmem [shape: f32[2,1,128], index: 1, kind: input, shape index: {}]
  %s2 = inlined_call_operand.vmem [shape: f32[1,16,1], index: 2, kind: input, shape index: {}]
  %s3 = inlined_call_operand.hbm [shape: bf16[256,128], index: 3, kind: input, shape index: {}]
  %s4 = inlined_call_operand.vmem [shape: f32[1,1,128], index: 4, kind: input, shape index: {}]
  %s5 = inlined_call_operand.hbm [shape: f32[2,16], index: 5, kind: output, shape index: {0}]
  %s6 = inlined_call_operand.hbm [shape: f32[2,1,256], index: 6, kind: output, shape index: {1}]
  %7 = xla_tuple %s5, %s6
  %s8 = sld [smem:[#allocation0]]
  $region46: #{tpu_custom_call.1} parent=0
    _
  %s10 = ssub.s32 1, %s8
  %s11 = scalar_select 0, %s10, %s8
  $region1: #{tpu_custom_call.1} parent=0
    #allocation2 [shape = 'u8[16384]{0}', space=vmem, size = 0x4000, scoped, tag = 'input window, operand 0, single buffered']
    #allocation3 [shape = 's32[1]{0}', space=sflag, size = 0x4, scoped, tag = 'scoped memory for tpu_custom_call.1']
    #allocation4 [shape = 's32[1]{0}', space=sflag, size = 0x4, scoped, tag = 'scoped memory for tpu_custom_call.1']
    #allocation5 [shape = 'u8[65536]{0}', space=vmem, size = 0x10000, scoped, tag = 'input window, operand 3, single buffered']
    #allocation6 [shape = 's32[1]{0}', space=sflag, size = 0x4, scoped, tag = 'scoped memory for tpu_custom_call.1']
    #allocation7 [shape = 'u8[1024]{0}', space=vmem, size = 0x400, scoped, tag = 'output window, operand 0, single buffered']
    #allocation8 [shape = 'u8[2048]{0}', space=vmem, size = 0x800, scoped, tag = 'output window, operand 1, single buffered']
    #allocation9 [shape = 's32[1]{0}', space=sflag, size = 0x4, scoped, tag = 'scoped memory for tpu_custom_call.1']
    %12 = vsyncpa [#allocation3], 0
    %13 = vsyncpa [#allocation6], 0
    %14 = vsyncpa [#allocation4], 0
    %15 = vsyncpa [#allocation9], 0
    // Predicated region
    $region2: #{tpu_custom_call.1} parent=1 // pred_check
      _
    $region3: #{tpu_custom_call.1} parent=1 // pred_check_branch
      %17 = sbr.rel (0) target = $region5
    $region4: #{tpu_custom_call.1} parent=1 // pred_region
      %s19 = ssub.s32 512, 512
      %20 = vsyncadd [#allocation3], %s19
      %s21 = sshll.u32 [#allocation2], 4
      %s22 = int_to_ptr.vmem [resolvable:$true] %s21
      %27 = dma.hbm_to_vmem [thread:$0]  %s0, 512, %s22, [#allocation3], 128, 128, 8
    $region5: #{tpu_custom_call.1} parent=1 // pred_fallthru
      _
    // Predicated region
    $region6: #{tpu_custom_call.1} parent=1 // pred_check
      _
    $region7: #{tpu_custom_call.1} parent=1 // pred_check_branch
      %29 = sbr.rel (0) target = $region9
    $region8: #{tpu_custom_call.1} parent=1 // pred_region
      _
    $region9: #{tpu_custom_call.1} parent=1 // pred_fallthru
      _
    // Predicated region
    $region10: #{tpu_custom_call.1} parent=1 // pred_check
      _
    $region11: #{tpu_custom_call.1} parent=1 // pred_check_branch
      %31 = sbr.rel (0) target = $region13
    $region12: #{tpu_custom_call.1} parent=1 // pred_region
      _
    $region13: #{tpu_custom_call.1} parent=1 // pred_fallthru
      _
    // Predicated region
    $region14: #{tpu_custom_call.1} parent=1 // pred_check
      _
    $region15: #{tpu_custom_call.1} parent=1 // pred_check_branch
      %33 = sbr.rel (0) target = $region17
    $region16: #{tpu_custom_call.1} parent=1 // pred_region
      %s35 = ssub.s32 2048, 2048
      %36 = vsyncadd [#allocation6], %s35
      %s37 = sshll.u32 [#allocation5], 4
      %s38 = int_to_ptr.vmem [resolvable:$true] %s37
      %43 = dma.hbm_to_vmem [thread:$0]  %s3, 2048, %s38, [#allocation6], 64, 64, 4
    $region17: #{tpu_custom_call.1} parent=1 // pred_fallthru
      _
    // Predicated region
    $region18: #{tpu_custom_call.1} parent=1 // pred_check
      _
    $region19: #{tpu_custom_call.1} parent=1 // pred_check_branch
      %45 = sbr.rel (0) target = $region21
    $region20: #{tpu_custom_call.1} parent=1 // pred_region
      _
    $region21: #{tpu_custom_call.1} parent=1 // pred_fallthru
      _
    // Predicated region
    $region22: #{tpu_custom_call.1} parent=1 // pred_check
      _
    $region23: #{tpu_custom_call.1} parent=1 // pred_check_branch
      %47 = sbr.rel (0) target = $region25
    $region24: #{tpu_custom_call.1} parent=1 // pred_region
      %48 = dma.done [#allocation3], 512
    $region25: #{tpu_custom_call.1} parent=1 // pred_fallthru
      _
    // Predicated region
    $region26: #{tpu_custom_call.1} parent=1 // pred_check
      _
    $region27: #{tpu_custom_call.1} parent=1 // pred_check_branch
      %50 = sbr.rel (0) target = $region29
    $region28: #{tpu_custom_call.1} parent=1 // pred_region
      %51 = dma.done [#allocation6], 2048
    $region29: #{tpu_custom_call.1} parent=1 // pred_fallthru
      _
    %v53 = vld [vmem:[#allocation2] sm:$0xff]
    %v54 = vld [vmem:[#allocation2 + $0x8] sm:$0xff]
    %v55 = vld [vmem:[#allocation2 + $0x10] sm:$0xff]
    %v56 = vld [vmem:[#allocation2 + $0x18] sm:$0xff]
    %v57 = vld [vmem:[#allocation5] sm:$0xf]
    %v58 = vld [vmem:[#allocation5 + $0x4] sm:$0xf]
    %v59 = vld [vmem:[#allocation5 + $0x8] sm:$0xf]
    %v60 = vld [vmem:[#allocation5 + $0xc] sm:$0xf]
    %v61 = vld [vmem:[#allocation5 + $0x10] sm:$0xf]
    %v62 = vld [vmem:[#allocation5 + $0x14] sm:$0xf]
    %v63 = vld [vmem:[#allocation5 + $0x18] sm:$0xf]
    %v64 = vld [vmem:[#allocation5 + $0x1c] sm:$0xf]
    %v65 = vld [vmem:[#allocation5 + $0x20] sm:$0xf]
    %v66 = vld [vmem:[#allocation5 + $0x24] sm:$0xf]
    %v67 = vld [vmem:[#allocation5 + $0x28] sm:$0xf]
    %v68 = vld [vmem:[#allocation5 + $0x2c] sm:$0xf]
    %v69 = vld [vmem:[#allocation5 + $0x30] sm:$0xf]
    %v70 = vld [vmem:[#allocation5 + $0x34] sm:$0xf]
    %v71 = vld [vmem:[#allocation5 + $0x38] sm:$0xf]
    %v72 = vld [vmem:[#allocation5 + $0x3c] sm:$0xf]
    %v73 = vld [vmem:[#allocation5 + $0x40] sm:$0xf]
    %v74 = vld [vmem:[#allocation5 + $0x44] sm:$0xf]
    %v75 = vld [vmem:[#allocation5 + $0x48] sm:$0xf]
    %v76 = vld [vmem:[#allocation5 + $0x4c] sm:$0xf]
    %v77 = vld [vmem:[#allocation5 + $0x50] sm:$0xf]
    %v78 = vld [vmem:[#allocation5 + $0x54] sm:$0xf]
    %v79 = vld [vmem:[#allocation5 + $0x58] sm:$0xf]
    %v80 = vld [vmem:[#allocation5 + $0x5c] sm:$0xf]
    %v81 = vld [vmem:[#allocation5 + $0x60] sm:$0xf]
    %v82 = vld [vmem:[#allocation5 + $0x64] sm:$0xf]
    %v83 = vld [vmem:[#allocation5 + $0x68] sm:$0xf]
    %v84 = vld [vmem:[#allocation5 + $0x6c] sm:$0xf]
    %v85 = vld [vmem:[#allocation5 + $0x70] sm:$0xf]
    %v86 = vld [vmem:[#allocation5 + $0x74] sm:$0xf]
    %v87 = vld [vmem:[#allocation5 + $0x78] sm:$0xf]
    %v88 = vld [vmem:[#allocation5 + $0x7c] sm:$0xf]
    %v93 = vunpack.c.l.b16 %v53
    %v94 = vunpack.c.h.b16 %v53
    %v95 = vunpack.c.l.b16 %v54
    %v96 = vunpack.c.h.b16 %v54
    %v97 = vunpack.c.l.b16 %v55
    %v98 = vunpack.c.h.b16 %v55
    %v99 = vunpack.c.l.b16 %v56
    %v100 = vunpack.c.h.b16 %v56
    %v101 = vpack.c.b16 %v95, %v93
    %v102 = vpack.c.b16 %v96, %v94
    %v103 = vpack.c.b16 %v99, %v97
    %v104 = vpack.c.b16 %v100, %v98
    %v141 = vunpack.c.l.b16 %v57
    %v142 = vunpack.c.l.b16 %v58
    %v143 = vunpack.c.l.b16 %v59
    %v144 = vunpack.c.l.b16 %v60
    %v145 = vunpack.c.l.b16 %v61
    %v146 = vunpack.c.l.b16 %v62
    %v147 = vunpack.c.l.b16 %v63
    %v148 = vunpack.c.l.b16 %v64
    %v149 = vunpack.c.l.b16 %v65
    %v150 = vunpack.c.l.b16 %v66
    %v151 = vunpack.c.l.b16 %v67
    %v152 = vunpack.c.l.b16 %v68
    %v153 = vunpack.c.l.b16 %v69
    %v154 = vunpack.c.l.b16 %v70
    %v155 = vunpack.c.l.b16 %v71
    %v156 = vunpack.c.l.b16 %v72
    %v157 = vunpack.c.l.b16 %v73
    %v158 = vunpack.c.l.b16 %v74
    %v159 = vunpack.c.l.b16 %v75
    %v160 = vunpack.c.l.b16 %v76
    %v161 = vunpack.c.l.b16 %v77
    %v162 = vunpack.c.l.b16 %v78
    %v163 = vunpack.c.l.b16 %v79
    %v164 = vunpack.c.l.b16 %v80
    %v165 = vunpack.c.l.b16 %v81
    %v166 = vunpack.c.l.b16 %v82
    %v167 = vunpack.c.l.b16 %v83
    %v168 = vunpack.c.l.b16 %v84
    %v169 = vunpack.c.l.b16 %v85
    %v170 = vunpack.c.l.b16 %v86
    %v171 = vunpack.c.l.b16 %v87
    %v172 = vunpack.c.l.b16 %v88
    %v173 = vpack.c.b16 %v142, %v141
    %v174 = vpack.c.b16 %v144, %v143
    %v175 = vpack.c.b16 %v146, %v145
    %v176 = vpack.c.b16 %v148, %v147
    %v177 = vpack.c.b16 %v150, %v149
    %v178 = vpack.c.b16 %v152, %v151
    %v179 = vpack.c.b16 %v154, %v153
    %v180 = vpack.c.b16 %v156, %v155
    %v181 = vpack.c.b16 %v158, %v157
    %v182 = vpack.c.b16 %v160, %v159
    %v183 = vpack.c.b16 %v162, %v161
    %v184 = vpack.c.b16 %v164, %v163
    %v185 = vpack.c.b16 %v166, %v165
    %v186 = vpack.c.b16 %v168, %v167
    %v187 = vpack.c.b16 %v170, %v169
    %v188 = vpack.c.b16 %v172, %v171
    %205 = vmatprep.subr.bf16.mxu0 0
    %206 = vmatpush1.bf16.msra.mxu0 %v173
    %207 = vmatprep.subr.bf16.mxu0 0
    %208 = vmatpush1.bf16.msra.mxu0 %v174
    %209 = vmatprep.subr.bf16.mxu0 0
    %210 = vmatpush1.bf16.msra.mxu0 %v175
    %211 = vmatprep.subr.bf16.mxu0 0
    %212 = vmatpush1.bf16.msra.mxu0 %v176
    %213 = vmatprep.subr.bf16.mxu0 0
    %214 = vmatpush1.bf16.msra.mxu0 %v177
    %215 = vmatprep.subr.bf16.mxu0 0
    %216 = vmatpush1.bf16.msra.mxu0 %v178
    %217 = vmatprep.subr.bf16.mxu0 0
    %218 = vmatpush1.bf16.msra.mxu0 %v179
    %219 = vmatprep.subr.bf16.mxu0 0
    %220 = vmatpush1.bf16.msra.mxu0 %v180
    %221 = vmatprep.subr.bf16.mxu0 0
    %222 = vmatpush1.bf16.msra.mxu0 %v181
    %223 = vmatprep.subr.bf16.mxu0 0
    %224 = vmatpush1.bf16.msra.mxu0 %v182
    %225 = vmatprep.subr.bf16.mxu0 0
    %226 = vmatpush1.bf16.msra.mxu0 %v183
    %227 = vmatprep.subr.bf16.mxu0 0
    %228 = vmatpush1.bf16.msra.mxu0 %v184
    %229 = vmatprep.subr.bf16.mxu0 0
    %230 = vmatpush1.bf16.msra.mxu0 %v185
    %231 = vmatprep.subr.bf16.mxu0 0
    %232 = vmatpush1.bf16.msra.mxu0 %v186
    %233 = vmatprep.subr.bf16.mxu0 0
    %234 = vmatpush1.bf16.msra.mxu0 %v187
    %235 = vmatprep.subr.bf16.mxu0 0
    %236 = vmatpush1.bf16.msra.mxu0 %v188
    %237 = vmatprep.mubr.bf16.mxu0 %v102
    %238 = vmatmul.mubr.bf16.gmra.mrb[0].mxu0 %v101
    %v239 = vpop.f32.mrb[0].mxu0
    %v240 = vadd.f32 0.0, %v239
    %v241 = vpop.f32.mrb[0].mxu0
    %v242 = vpop.f32.mrb[0].mxu0
    %v243 = vadd.f32 0.0, %v242
    %v244 = vpop.f32.mrb[0].mxu0
    %245 = vmatprep.mubr.bf16.mxu0 %v104
    %246 = vmatmul.mubr.bf16.gmra.mrb[0].mxu0 %v103
    %v247 = vpop.f32.mrb[0].mxu0
    %v248 = vadd.f32 0.0, %v247
    %v249 = vpop.f32.mrb[0].mxu0
    %v250 = vpop.f32.mrb[0].mxu0
    %v251 = vadd.f32 0.0, %v250
    %v252 = vpop.f32.mrb[0].mxu0
    %253 = vdwg.mxu0
    %v254 = vld [vmem:[%s1] sm:$0x1]
    %v255 = vld [vmem:[%s1 + $0x1] sm:$0x1]
    %v258 = vlaneseq
    %v259 = vshrl.u32 %v258, 7
    %v260 = vsub.s32 0, %v259
    %v261 = vrot.slane %v254, %v260
    %v262 = vlaneseq
    %v263 = vshrl.u32 %v262, 7
    %v264 = vsub.s32 0, %v263
    %v265 = vrot.slane %v255, %v264
    %v268 = vadd.f32 %v240, %v261
    %v269 = vadd.f32 %v243, %v261
    %v270 = vadd.f32 %v248, %v265
    %v271 = vadd.f32 %v251, %v265
    %v272 = vtanh.pop %v268
    %v273 = vtanh.pop %v269
    %v274 = vtanh.pop %v270
    %v275 = vtanh.pop %v271
    %v276 = vld [vmem:[%s4] sm:$0x1]
    %v278 = vlaneseq
    %v279 = vshrl.u32 %v278, 7
    %v280 = vsub.s32 0, %v279
    %v281 = vrot.slane %v276, %v280
    %v283 = vmul.f32 %v272, %v281
    %v284 = vmul.f32 %v273, %v281
    %v285 = vmul.f32 %v274, %v281
    %v286 = vmul.f32 %v275, %v281
    %287 = vadd.xlane.f32.xlu0 %v283
    %v288 = vpop.xlane.xlu0 %287
    %289 = vadd.xlane.f32.xlu0 %v284
    %v290 = vpop.xlane.xlu0 %289
    %291 = vadd.xlane.f32.xlu0 %v285
    %v292 = vpop.xlane.xlu0 %291
    %293 = vadd.xlane.f32.xlu0 %v286
    %v294 = vpop.xlane.xlu0 %293
    %v295 = vld [vmem:[%s2] sm:$0xff]
    %v296 = vld [vmem:[%s2 + $0x8] sm:$0xff]
    %v297 = vadd.f32 %v288, %v295
    %v298 = vadd.f32 %v290, %v296
    %v299 = vadd.f32 %v292, %v295
    %v300 = vadd.f32 %v294, %v296
    %vm301 = vcmask 7168
    %v302 = vsel %vm301, %v297, -inf
    %v303 = vsel %vm301, %v298, -inf
    %v304 = vmax.f32 %v302, %v303
    %v305 = vrot.slane %v304, 4
    %v306 = vmax.f32 %v304, %v305
    %v307 = vrot.slane %v306, 2
    %v308 = vmax.f32 %v306, %v307
    %v309 = vrot.slane %v308, 1
    %v310 = vmax.f32 %v308, %v309
    %v311 = vsel %vm301, %v299, -inf
    %v312 = vsel %vm301, %v300, -inf
    %v313 = vmax.f32 %v311, %v312
    %v314 = vrot.slane %v313, 4
    %v315 = vmax.f32 %v313, %v314
    %v316 = vrot.slane %v315, 2
    %v317 = vmax.f32 %v315, %v316
    %v318 = vrot.slane %v317, 1
    %v319 = vmax.f32 %v317, %v318
    %v320 = vsub.f32 %v297, %v310
    %v321 = vsub.f32 %v298, %v310
    %v322 = vsub.f32 %v299, %v319
    %v323 = vsub.f32 %v300, %v319
    %v324 = vmul.f32 %v320, 1.442695
    %v325 = vpow.pop %v324
    %v326 = vmul.f32 %v321, 1.442695
    %v327 = vpow.pop %v326
    %v328 = vmul.f32 %v322, 1.442695
    %v329 = vpow.pop %v328
    %v330 = vmul.f32 %v323, 1.442695
    %v331 = vpow.pop %v330
    %v332 = vsel %vm301, %v325, 0.0
    %v333 = vsel %vm301, %v327, 0.0
    %v334 = vadd.f32 %v332, %v333
    %v335 = vrot.slane %v334, 4
    %v336 = vadd.f32 %v334, %v335
    %v337 = vrot.slane %v336, 2
    %v338 = vadd.f32 %v336, %v337
    %v339 = vrot.slane %v338, 1
    %v340 = vadd.f32 %v338, %v339
    %v341 = vsel %vm301, %v329, 0.0
    %v342 = vsel %vm301, %v331, 0.0
    %v343 = vadd.f32 %v341, %v342
    %v344 = vrot.slane %v343, 4
    %v345 = vadd.f32 %v343, %v344
    %v346 = vrot.slane %v345, 2
    %v347 = vadd.f32 %v345, %v346
    %v348 = vrot.slane %v347, 1
    %v349 = vadd.f32 %v347, %v348
    %v350 = vrcp.pop %v340
    %v351 = vrcp.pop %v349
    %v352 = vmul.f32 %v325, %v350
    %v353 = vmul.f32 %v327, %v350
    %v354 = vmul.f32 %v329, %v351
    %v355 = vmul.f32 %v331, %v351
    %360 = vset.pattern.permute.xlu0 0
    %361 = vperm.xlu0 %360, %v352
    %v362 = vpop.permute.xlu0 %361
    %363 = vset.pattern.permute.xlu0 0
    %364 = vperm.xlu0 %363, %v353
    %v365 = vpop.permute.xlu0 %364
    %366 = vset.pattern.permute.xlu0 0
    %367 = vperm.xlu0 %366, %v354
    %v368 = vpop.permute.xlu0 %367
    %369 = vset.pattern.permute.xlu0 0
    %370 = vperm.xlu0 %369, %v355
    %v371 = vpop.permute.xlu0 %370
    %v372 = vlaneseq
    %v373 = vand.u32 %v372, 127
    %v374 = vlaneseq
    %v375 = vshrl.u32 %v374, 7
    %v376 = vsub.s32 %v373, %v375
    %v377 = vrot.slane %v362, %v376
    %v378 = vadd.s32 %v373, 4294967288
    %v379 = vlaneseq
    %v380 = vshrl.u32 %v379, 7
    %v381 = vsub.s32 %v378, %v380
    %v382 = vrot.slane %v365, %v381
    %vm383 = vcmask 130112
    %v384 = vsel %vm383, %v382, %v377
    %v385 = vlaneseq
    %v386 = vshrl.u32 %v385, 7
    %v387 = vsub.s32 %v373, %v386
    %v388 = vrot.slane %v368, %v387
    %v389 = vlaneseq
    %v390 = vshrl.u32 %v389, 7
    %v391 = vsub.s32 %v378, %v390
    %v392 = vrot.slane %v371, %v391
    %v393 = vsel %vm383, %v392, %v388
    %vm394 = vcmask 1041409
    %v395 = vsel %vm394, %v393, %v384
    %vm397 = vcmask 123904
    %398 = vst.msk [vmem:[#allocation7] sm:$0x3] %vm397, %v395
    %v399 = vunpack.c.l.bf16 %v53
    %v400 = vunpack.c.h.bf16 %v53
    %v401 = vunpack.c.l.bf16 %v54
    %v402 = vunpack.c.h.bf16 %v54
    %v403 = vunpack.c.l.bf16 %v55
    %v404 = vunpack.c.h.bf16 %v55
    %v405 = vunpack.c.l.bf16 %v56
    %v406 = vunpack.c.h.bf16 %v56
    %v411 = vmul.f32 %v399, %v362
    %v412 = vmul.f32 %v400, %v362
    %v413 = vmul.f32 %v401, %v365
    %v414 = vmul.f32 %v402, %v365
    %v415 = vmul.f32 %v403, %v368
    %v416 = vmul.f32 %v404, %v368
    %v417 = vmul.f32 %v405, %v371
    %v418 = vmul.f32 %v406, %v371
    %v419 = vadd.f32 %v411, %v413
    %v420 = vrot.slane %v419, 4
    %v421 = vadd.f32 %v419, %v420
    %v422 = vrot.slane %v421, 2
    %v423 = vadd.f32 %v421, %v422
    %v424 = vrot.slane %v423, 1
    %v425 = vadd.f32 %v423, %v424
    %v426 = vadd.f32 %v412, %v414
    %v427 = vrot.slane %v426, 4
    %v428 = vadd.f32 %v426, %v427
    %v429 = vrot.slane %v428, 2
    %v430 = vadd.f32 %v428, %v429
    %v431 = vrot.slane %v430, 1
    %v432 = vadd.f32 %v430, %v431
    %v433 = vadd.f32 %v415, %v417
    %v434 = vrot.slane %v433, 4
    %v435 = vadd.f32 %v433, %v434
    %v436 = vrot.slane %v435, 2
    %v437 = vadd.f32 %v435, %v436
    %v438 = vrot.slane %v437, 1
    %v439 = vadd.f32 %v437, %v438
    %v440 = vadd.f32 %v416, %v418
    %v441 = vrot.slane %v440, 4
    %v442 = vadd.f32 %v440, %v441
    %v443 = vrot.slane %v442, 2
    %v444 = vadd.f32 %v442, %v443
    %v445 = vrot.slane %v444, 1
    %v446 = vadd.f32 %v444, %v445
    %v451 = vcombine.low %v425, %v432
    %v453 = vunpack.c.l.s4 1966171168
    %v454 = vunpack.c.0.s8 %v453
    %v455 = vlaneseq
    %v456 = vshrl.u32 %v455, 7
    %v457 = vsub.s32 %v454, %v456
    %v458 = vrot.slane %v451, %v457
    %v460 = vunpack.c.l.s4 1966171168
    %v461 = vunpack.c.0.s8 %v460
    %v462 = vlaneseq
    %v463 = vshrl.u32 %v462, 7
    %v464 = vsub.s32 %v461, %v463
    %v465 = vrot.slane %v458, %v464
    %v466 = vcombine.low %v439, %v446
    %v468 = vunpack.c.l.s4 1966171168
    %v469 = vunpack.c.0.s8 %v468
    %v470 = vlaneseq
    %v471 = vshrl.u32 %v470, 7
    %v472 = vsub.s32 %v469, %v471
    %v473 = vrot.slane %v466, %v472
    %v475 = vunpack.c.l.s4 1966171168
    %v476 = vunpack.c.0.s8 %v475
    %v477 = vlaneseq
    %v478 = vshrl.u32 %v477, 7
    %v479 = vsub.s32 %v476, %v478
    %v480 = vrot.slane %v473, %v479
    %v483 = vlaneseq
    %vm484 = vcmp.ge.s32.totalorder %v483, 0
    %vm485 = vcmp.lt.s32.totalorder %v483, 256
    %vm486 = vmand %vm484, %vm485
    %487 = vst.msk [vmem:[#allocation8] sm:$0x3] %vm486, %v465
    %488 = vst.msk [vmem:[#allocation8 + $0x2] sm:$0x3] %vm486, %v480
    // Predicated region
    $region30: #{tpu_custom_call.1} parent=1 // pred_check
      _
    $region31: #{tpu_custom_call.1} parent=1 // pred_check_branch
      %490 = sbr.rel (0) target = $region33
    $region32: #{tpu_custom_call.1} parent=1 // pred_region
      %s492 = ssub.s32 32, 32
      %493 = vsyncadd [#allocation4], %s492
      %s495 = sshll.u32 [#allocation7], 4
      %s496 = int_to_ptr.vmem [resolvable:$true] %s495
      %498 = dma.vmem_to_hbm [thread:$0]  %s496, 32, %s5, [#allocation4]
    $region33: #{tpu_custom_call.1} parent=1 // pred_fallthru
      _
    // Predicated region
    $region34: #{tpu_custom_call.1} parent=1 // pred_check
      _
    $region35: #{tpu_custom_call.1} parent=1 // pred_check_branch
      %500 = sbr.rel (0) target = $region37
    $region36: #{tpu_custom_call.1} parent=1 // pred_region
      %s502 = ssub.s32 64, 64
      %503 = vsyncadd [#allocation9], %s502
      %s504 = sshll.u32 [#allocation8], 4
      %s505 = int_to_ptr.vmem [resolvable:$true] %s504
      %510 = dma.vmem_to_hbm [thread:$0]  %s505, 64, %s6, [#allocation9], 32, 32, 2
    $region37: #{tpu_custom_call.1} parent=1 // pred_fallthru
      _
    // Predicated region
    $region38: #{tpu_custom_call.1} parent=1 // pred_check
      _
    $region39: #{tpu_custom_call.1} parent=1 // pred_check_branch
      %512 = sbr.rel (0) target = $region41
    $region40: #{tpu_custom_call.1} parent=1 // pred_region
      %513 = dma.done [#allocation4], 32
    $region41: #{tpu_custom_call.1} parent=1 // pred_fallthru
      _
    // Predicated region
    $region42: #{tpu_custom_call.1} parent=1 // pred_check
      _
    $region43: #{tpu_custom_call.1} parent=1 // pred_check_branch
      %515 = sbr.rel (0) target = $region45
    $region44: #{tpu_custom_call.1} parent=1 // pred_region
      %516 = dma.done [#allocation9], 64
    $region45: #{tpu_custom_call.1} parent=1 // pred_fallthru
      _
    %517 = vsyncpa [#allocation3], 1
    %518 = vsyncpa [#allocation6], 1
    %519 = vsyncpa [#allocation4], 1
    %520 = vsyncpa [#allocation9], 1

</llo_original>
